<compile_context>
chip_gen: v5e
topology: v5e:2x2
jax: 0.10.0
libtpu: 0.0.40
codegen_flags: <defaults>
</compile_context>

<pallas_src>
import jax
import jax.numpy as jnp
from jax.experimental import pallas as pl
from jax.experimental.pallas import tpu as pltpu

CMID = 8        # real conv mid channels
CMID_P = 128    # lane-padded mid channels
FEAT = 32       # real embedding width
FEAT_P = 128    # lane-padded embedding width
NCLS = 2        # real classifier width
NCLS_P = 128    # lane-padded classifier width


# ------------------------- representative parameters ------------------------

def init_params(key, cin=4, cmid=CMID, feat=FEAT, ncls=NCLS):
    ks = jax.random.split(key, 6)
    base = {
        "conv_w": 0.1 * jax.random.normal(ks[0], (9 * cin, cmid), jnp.float32),
        "conv_b": jnp.zeros((1, cmid), jnp.float32),
        "fc_w": 0.1 * jax.random.normal(ks[1], (cmid, feat), jnp.float32),
        "fc_b": 0.01 * jax.random.normal(ks[2], (1, feat), jnp.float32),
    }
    # BatchNorm1d in inference mode with deterministic running stats.
    embed = {
        "bn_gamma": jnp.ones((1, feat), jnp.float32),
        "bn_beta": jnp.zeros((1, feat), jnp.float32),
        "bn_mean": jnp.zeros((1, feat), jnp.float32),
        "bn_var": jnp.ones((1, feat), jnp.float32),
        "cls_w": 0.1 * jax.random.normal(ks[3], (feat, ncls), jnp.float32),
        "cls_b": jnp.zeros((1, ncls), jnp.float32),
    }
    return {"base": base, "embed": embed}


def prepare_params(params, hw, cmid_pad=CMID_P, feat_pad=FEAT_P,
                   ncls_pad=NCLS_P, eps=1e-5):
    """Host-side, one-time: fold BN into scale/shift, fold 1/HW into fc_w,
    zero-pad mid channels / features / classes to 128 lanes, and cast
    MXU-feeding weights to bf16 (biases / BN stay f32)."""
    b, e = params["base"], params["embed"]
    k9c, cmid = b["conv_w"].shape
    feat = b["fc_w"].shape[1]
    ncls = e["cls_w"].shape[1]

    conv_w = jnp.zeros((k9c, cmid_pad), jnp.float32).at[:, :cmid].set(b["conv_w"])
    conv_b = jnp.zeros((1, cmid_pad), jnp.float32).at[:, :cmid].set(b["conv_b"])

    # 1/HW folded here so the in-kernel global avg pool is a plain sum.
    fc_w = jnp.zeros((cmid_pad, feat_pad), jnp.float32)
    fc_w = fc_w.at[:cmid, :feat].set(b["fc_w"] * (1.0 / float(hw)))
    fc_b = jnp.zeros((1, feat_pad), jnp.float32).at[:, :feat].set(b["fc_b"])

    bn_scale = e["bn_gamma"] * jax.lax.rsqrt(e["bn_var"] + eps)
    bn_shift = e["bn_beta"] - e["bn_mean"] * bn_scale
    bn_scale_p = jnp.zeros((1, feat_pad), jnp.float32).at[:, :feat].set(bn_scale)
    bn_shift_p = jnp.zeros((1, feat_pad), jnp.float32).at[:, :feat].set(bn_shift)

    cls_w = jnp.zeros((feat_pad, ncls_pad), jnp.float32).at[:feat, :ncls].set(e["cls_w"])
    cls_b = jnp.zeros((1, ncls_pad), jnp.float32).at[:, :ncls].set(e["cls_b"])

    return {
        "conv_w": conv_w.astype(jnp.bfloat16),
        "conv_b": conv_b,
        "fc_w": fc_w.astype(jnp.bfloat16),
        "fc_b": fc_b,
        "bn_scale": bn_scale_p,
        "bn_shift": bn_shift_p,
        "cls_w": cls_w.astype(jnp.bfloat16),
        "cls_b": cls_b,
    }


def _images_per_step(nb, hw, k, cmp, vmem_budget_bytes=8 << 20):
    """Largest divisor of NB whose per-step footprint (double-buffered bf16
    cols block + f32 conv/ReLU slab) stays inside a conservative VMEM budget
    (safe under v7x's 32 MiB default scoped limit / 64 MiB physical)."""
    per_img = 2 * hw * k * 2 + 2 * hw * cmp * 4
    imgs = max(1, min(nb, vmem_budget_bytes // per_img))
    while nb % imgs:
        imgs -= 1
    return imgs


# ------------------------------ fused forward --------------------------------

def siamese_forward(x1, x2, prep):
    """SiameseNet.forward -> (f1, f2, embed(f1, f2)) in one fused Pallas kernel."""
    B, C, H, W = x1.shape
    NB, HW, K = 2 * B, H * W, 9 * C
    CMP = prep["conv_w"].shape[1]
    FP = prep["fc_w"].shape[1]
    NCP = prep["cls_w"].shape[1]

    IMGS = _images_per_step(NB, HW, K, CMP)      # all NB at this toy size
    NSTEPS = NB // IMGS

    # Host glue: batch both branches, NCHW->NHWC, pad, 3x3 im2col, bf16 feed.
    # TODO(synk): at production ReID resolutions move this 3x3 im2col into the
    # kernel (9 shifted-slice MXU accumulations on the padded NHWC tile) to
    # avoid the 9x HBM inflation; at 16x16x4 it is noise.
    x = jnp.transpose(jnp.concatenate([x1, x2], axis=0), (0, 2, 3, 1))
    xp = jnp.pad(x, ((0, 0), (1, 1), (1, 1), (0, 0)))
    cols = jnp.concatenate(
        [xp[:, i:i + H, j:j + W, :] for i in range(3) for j in range(3)],
        axis=-1,
    ).reshape(NB * HW, K).astype(jnp.bfloat16)

    def kernel(cols_ref, cw_ref, cb_ref, fw_ref, fb_ref,
               s_ref, t_ref, ww_ref, wb_ref, feats_ref, logits_ref):
        n = pl.program_id(0)

        # ---- base model for IMGS images: conv3x3 as one MXU matmul ---------
        conv = jnp.dot(cols_ref[...], cw_ref[...],
                       preferred_element_type=jnp.float32) + cb_ref[...]
        act = jnp.maximum(conv, 0.0)                      # ReLU (f32 VPU)
        # Global avg pool: sum per image; 1/HW pre-folded into fc_w.
        pooled = jnp.sum(act.reshape(IMGS, HW, CMP), axis=1)
        feat = jnp.dot(pooled.astype(jnp.bfloat16), fw_ref[...],
                       preferred_element_type=jnp.float32) + fb_ref[...]

        start = n * IMGS
        if IMGS % 8 == 0:
            start = pl.multiple_of(start, 8)
        feats_ref[pl.ds(start, IMGS), :] = feat           # lane-dense block store

        # ---- embed model epilogue: runs once after both branches are done --
        # Requires a sequential grid ("arbitrary") since it reads the resident
        # feats buffer; for v7x multi-step grids split this into its own call.
        @pl.when(n == NSTEPS - 1)
        def _():
            f = feats_ref[...]                            # [2B, FP] resident
            d = f[:B, :] - f[B:, :]
            d = d * d                                     # (f1 - f2)^2, f32
            d = d * s_ref[...] + t_ref[...]               # folded BatchNorm1d
            logits_ref[...] = (jnp.dot(d.astype(jnp.bfloat16), ww_ref[...],
                                       preferred_element_type=jnp.float32)
                               + wb_ref[...])

    feats, logits = pl.pallas_call(
        kernel,
        out_shape=(jax.ShapeDtypeStruct((NB, FP), jnp.float32),
                   jax.ShapeDtypeStruct((B, NCP), jnp.float32)),
        grid_spec=pltpu.PrefetchScalarGridSpec(
            num_scalar_prefetch=0,
            grid=(NSTEPS,),                               # IMGS images / step
            in_specs=[
                pl.BlockSpec((IMGS * HW, K), lambda n: (n, 0)),  # image M-tile
                pl.BlockSpec((K, CMP), lambda n: (0, 0)),        # weights stay
                pl.BlockSpec((1, CMP), lambda n: (0, 0)),        # resident in
                pl.BlockSpec((CMP, FP), lambda n: (0, 0)),       # VMEM across
                pl.BlockSpec((1, FP), lambda n: (0, 0)),         # the grid
                pl.BlockSpec((1, FP), lambda n: (0, 0)),
                pl.BlockSpec((1, FP), lambda n: (0, 0)),
                pl.BlockSpec((FP, NCP), lambda n: (0, 0)),
                pl.BlockSpec((1, NCP), lambda n: (0, 0)),
            ],
            out_specs=[
                pl.BlockSpec((NB, FP), lambda n: (0, 0)),        # resident feats
                pl.BlockSpec((B, NCP), lambda n: (0, 0)),        # written last
            ],
        ),
        compiler_params=pltpu.CompilerParams(
            dimension_semantics=("arbitrary",)),
    )(cols, prep["conv_w"], prep["conv_b"], prep["fc_w"], prep["fc_b"],
      prep["bn_scale"], prep["bn_shift"], prep["cls_w"], prep["cls_b"])

    # Slice the lane padding back off on the host.
    return feats[:B, :FEAT], feats[B:, :FEAT], logits[:, :NCLS]


# ------------------------- pure-JAX reference (f32) --------------------------

def reference_forward(x1, x2, params):
    def base(x):
        b = params["base"]
        x = jnp.transpose(x, (0, 2, 3, 1))
        Bq, H, W, C = x.shape
        xp = jnp.pad(x, ((0, 0), (1, 1), (1, 1), (0, 0)))
        cols = jnp.concatenate(
            [xp[:, i:i + H, j:j + W, :] for i in range(3) for j in range(3)],
            axis=-1).reshape(Bq * H * W, 9 * C)
        conv = cols @ b["conv_w"] + b["conv_b"]
        act = jnp.maximum(conv, 0.0).reshape(Bq, H * W, -1)
        pooled = jnp.mean(act, axis=1)
        return pooled @ b["fc_w"] + b["fc_b"]

    e = params["embed"]
    f1, f2 = base(x1), base(x2)
    d = (f1 - f2) ** 2
    d = (d - e["bn_mean"]) * jax.lax.rsqrt(e["bn_var"] + 1e-5) * e["bn_gamma"] \
        + e["bn_beta"]
    return f1, f2, d @ e["cls_w"] + e["cls_b"]


# ---------------------------------- main -------------------------------------

if __name__ == "__main__":
    key = jax.random.PRNGKey(0)
    kx1, kx2, kp = jax.random.split(key, 3)

    B, C, H, W = 2, 4, 16, 16
    x1 = jax.random.normal(kx1, (B, C, H, W), jnp.float32)
    x2 = jax.random.normal(kx2, (B, C, H, W), jnp.float32)
    params = init_params(kp, cin=C)
    prep = prepare_params(params, hw=H * W)

    f1, f2, logits = jax.jit(siamese_forward)(x1, x2, prep)
    jax.block_until_ready((f1, f2, logits))

    assert f1.shape == (B, FEAT) and f2.shape == (B, FEAT)
    assert logits.shape == (B, NCLS)

    r1, r2, rl = reference_forward(x1, x2, params)
    assert jnp.allclose(f1, r1, atol=1e-2, rtol=1e-2)
    assert jnp.allclose(f2, r2, atol=1e-2, rtol=1e-2)
    assert jnp.allclose(logits, rl, atol=1e-2, rtol=1e-2)

    print("KERNEL_OK")
</pallas_src>

<mosaic_0001>
module attributes {stable_mosaic.version = 11 : i64} {
  func.func @kernel(%arg0: i32, %arg1: memref<1024x36xbf16, #tpu.memory_space<vmem>>, %arg2: memref<36x128xbf16, #tpu.memory_space<vmem>>, %arg3: memref<1x128xf32, #tpu.memory_space<vmem>>, %arg4: memref<128x128xbf16, #tpu.memory_space<vmem>>, %arg5: memref<1x128xf32, #tpu.memory_space<vmem>>, %arg6: memref<1x128xf32, #tpu.memory_space<vmem>>, %arg7: memref<1x128xf32, #tpu.memory_space<vmem>>, %arg8: memref<128x128xbf16, #tpu.memory_space<vmem>>, %arg9: memref<1x128xf32, #tpu.memory_space<vmem>>, %arg10: memref<4x128xf32, #tpu.memory_space<vmem>>, %arg11: memref<2x128xf32, #tpu.memory_space<vmem>>) attributes {dimension_semantics = [#tpu.dimension_semantics<arbitrary>], iteration_bounds = array<i64: 1>, scalar_prefetch = 0 : i64, scratch_operands = 0 : i64, tpu.core_type = #tpu.core_type<tc>, window_params = [{transform_indices = @transform_0, window_bounds = array<i64: 1024, 36>}, {pipeline_mode = #tpu.pipeline_mode<synchronous>, transform_indices = @transform_1, window_bounds = array<i64: 36, 128>}, {pipeline_mode = #tpu.pipeline_mode<synchronous>, transform_indices = @transform_2, window_bounds = array<i64: 1, 128>}, {pipeline_mode = #tpu.pipeline_mode<synchronous>, transform_indices = @transform_3, window_bounds = array<i64: 128, 128>}, {pipeline_mode = #tpu.pipeline_mode<synchronous>, transform_indices = @transform_4, window_bounds = array<i64: 1, 128>}, {pipeline_mode = #tpu.pipeline_mode<synchronous>, transform_indices = @transform_5, window_bounds = array<i64: 1, 128>}, {pipeline_mode = #tpu.pipeline_mode<synchronous>, transform_indices = @transform_6, window_bounds = array<i64: 1, 128>}, {pipeline_mode = #tpu.pipeline_mode<synchronous>, transform_indices = @transform_7, window_bounds = array<i64: 128, 128>}, {pipeline_mode = #tpu.pipeline_mode<synchronous>, transform_indices = @transform_8, window_bounds = array<i64: 1, 128>}, {pipeline_mode = #tpu.pipeline_mode<synchronous>, transform_indices = @transform_9, window_bounds = array<i64: 4, 128>}, {pipeline_mode = #tpu.pipeline_mode<synchronous>, transform_indices = @transform_10, window_bounds = array<i64: 2, 128>}]} {
    %c0 = arith.constant 0 : index
    %c0_0 = arith.constant 0 : index
    %0 = vector.load %arg1[%c0, %c0_0] : memref<1024x36xbf16, #tpu.memory_space<vmem>>, vector<1024x36xbf16>
    %c0_1 = arith.constant 0 : index
    %c0_2 = arith.constant 0 : index
    %1 = vector.load %arg2[%c0_1, %c0_2] : memref<36x128xbf16, #tpu.memory_space<vmem>>, vector<36x128xbf16>
    %cst = arith.constant dense<0.000000e+00> : vector<1024x128xf32>
    %2 = tpu.matmul %0, %1, %cst {dimension_numbers = #tpu.dot_dimension_numbers<[1], [0], [0], [1], [0, 0, 1, 1], [], []>} : vector<1024x36xbf16>, vector<36x128xbf16>, vector<1024x128xf32> -> vector<1024x128xf32>
    %c0_3 = arith.constant 0 : index
    %c0_4 = arith.constant 0 : index
    %3 = vector.load %arg3[%c0_3, %c0_4] : memref<1x128xf32, #tpu.memory_space<vmem>>, vector<1x128xf32>
    %4 = vector.broadcast %3 : vector<1x128xf32> to vector<1024x128xf32>
    %5 = arith.addf %2, %4 : vector<1024x128xf32>
    %cst_5 = arith.constant 0.000000e+00 : f32
    %6 = vector.broadcast %cst_5 : f32 to vector<1024x128xf32>
    %7 = arith.maximumf %5, %6 : vector<1024x128xf32>
    %8 = vector.shape_cast %7 : vector<1024x128xf32> to vector<4x256x128xf32>
    %cst_6 = arith.constant dense<0.000000e+00> : vector<4x128xf32>
    %9 = vector.multi_reduction <add>, %8, %cst_6 [1] : vector<4x256x128xf32> to vector<4x128xf32>
    %10 = arith.truncf %9 : vector<4x128xf32> to vector<4x128xbf16>
    %c0_7 = arith.constant 0 : index
    %c0_8 = arith.constant 0 : index
    %11 = vector.load %arg4[%c0_7, %c0_8] : memref<128x128xbf16, #tpu.memory_space<vmem>>, vector<128x128xbf16>
    %cst_9 = arith.constant dense<0.000000e+00> : vector<4x128xf32>
    %12 = tpu.matmul %10, %11, %cst_9 {dimension_numbers = #tpu.dot_dimension_numbers<[1], [0], [0], [1], [0, 0, 1, 1], [], []>} : vector<4x128xbf16>, vector<128x128xbf16>, vector<4x128xf32> -> vector<4x128xf32>
    %c0_10 = arith.constant 0 : index
    %c0_11 = arith.constant 0 : index
    %13 = vector.load %arg5[%c0_10, %c0_11] : memref<1x128xf32, #tpu.memory_space<vmem>>, vector<1x128xf32>
    %14 = vector.broadcast %13 : vector<1x128xf32> to vector<4x128xf32>
    %15 = arith.addf %12, %14 : vector<4x128xf32>
    %c4_i32 = arith.constant 4 : i32
    %16 = arith.muli %arg0, %c4_i32 : i32
    %17 = arith.index_cast %16 : i32 to index
    %c0_12 = arith.constant 0 : index
    %18 = vector.load %arg10[%17, %c0_12] : memref<4x128xf32, #tpu.memory_space<vmem>>, vector<4x128xf32>
    tpu.vector_store %arg10[%17, %c0_12], %15 {strides = array<i32>} : memref<4x128xf32, #tpu.memory_space<vmem>>, vector<4x128xf32>,
    %c0_i32 = arith.constant 0 : i32
    %19 = arith.cmpi eq, %arg0, %c0_i32 : i32
    %20 = arith.extui %19 : i1 to i32
    %c0_i32_13 = arith.constant 0 : i32
    %21 = arith.cmpi ne, %20, %c0_i32_13 : i32
    scf.if %21 {
      %c0_14 = arith.constant 0 : index
      %c0_15 = arith.constant 0 : index
      %22 = vector.load %arg10[%c0_14, %c0_15] : memref<4x128xf32, #tpu.memory_space<vmem>>, vector<4x128xf32>
      %23 = vector.extract_strided_slice %22 {offsets = [0, 0], sizes = [2, 128], strides = [1, 1]} : vector<4x128xf32> to vector<2x128xf32>
      %24 = vector.extract_strided_slice %22 {offsets = [2, 0], sizes = [2, 128], strides = [1, 1]} : vector<4x128xf32> to vector<2x128xf32>
      %25 = arith.subf %23, %24 : vector<2x128xf32>
      %26 = arith.mulf %25, %25 : vector<2x128xf32>
      %c0_16 = arith.constant 0 : index
      %c0_17 = arith.constant 0 : index
      %27 = vector.load %arg6[%c0_16, %c0_17] : memref<1x128xf32, #tpu.memory_space<vmem>>, vector<1x128xf32>
      %28 = vector.broadcast %27 : vector<1x128xf32> to vector<2x128xf32>
      %29 = arith.mulf %26, %28 : vector<2x128xf32>
      %c0_18 = arith.constant 0 : index
      %c0_19 = arith.constant 0 : index
      %30 = vector.load %arg7[%c0_18, %c0_19] : memref<1x128xf32, #tpu.memory_space<vmem>>, vector<1x128xf32>
      %31 = vector.broadcast %30 : vector<1x128xf32> to vector<2x128xf32>
      %32 = arith.addf %29, %31 : vector<2x128xf32>
      %33 = arith.truncf %32 : vector<2x128xf32> to vector<2x128xbf16>
      %c0_20 = arith.constant 0 : index
      %c0_21 = arith.constant 0 : index
      %34 = vector.load %arg8[%c0_20, %c0_21] : memref<128x128xbf16, #tpu.memory_space<vmem>>, vector<128x128xbf16>
      %cst_22 = arith.constant dense<0.000000e+00> : vector<2x128xf32>
      %35 = tpu.matmul %33, %34, %cst_22 {dimension_numbers = #tpu.dot_dimension_numbers<[1], [0], [0], [1], [0, 0, 1, 1], [], []>} : vector<2x128xbf16>, vector<128x128xbf16>, vector<2x128xf32> -> vector<2x128xf32>
      %c0_23 = arith.constant 0 : index
      %c0_24 = arith.constant 0 : index
      %36 = vector.load %arg9[%c0_23, %c0_24] : memref<1x128xf32, #tpu.memory_space<vmem>>, vector<1x128xf32>
      %37 = vector.broadcast %36 : vector<1x128xf32> to vector<2x128xf32>
      %38 = arith.addf %35, %37 : vector<2x128xf32>
      %c0_25 = arith.constant 0 : index
      %c0_26 = arith.constant 0 : index
      %39 = vector.load %arg11[%c0_25, %c0_26] : memref<2x128xf32, #tpu.memory_space<vmem>>, vector<2x128xf32>
      tpu.vector_store %arg11[%c0_25, %c0_26], %38 {strides = array<i32>} : memref<2x128xf32, #tpu.memory_space<vmem>>, vector<2x128xf32>,
    } else {
    }
    return
  }
  func.func @transform_0(%arg0: i32) -> (i32, i32) {
    %c0_i32 = arith.constant 0 : i32
    %c0_i32_0 = arith.constant 0 : i32
    return %arg0, %c0_i32 : i32, i32
  }
  func.func @transform_1(%arg0: i32) -> (i32, i32) {
    %c0_i32 = arith.constant 0 : i32
    %c0_i32_0 = arith.constant 0 : i32
    %c0_i32_1 = arith.constant 0 : i32
    return %c0_i32, %c0_i32_0 : i32, i32
  }
  func.func @transform_2(%arg0: i32) -> (i32, i32) {
    %c0_i32 = arith.constant 0 : i32
    %c0_i32_0 = arith.constant 0 : i32
    %c0_i32_1 = arith.constant 0 : i32
    return %c0_i32, %c0_i32_0 : i32, i32
  }
  func.func @transform_3(%arg0: i32) -> (i32, i32) {
    %c0_i32 = arith.constant 0 : i32
    %c0_i32_0 = arith.constant 0 : i32
    %c0_i32_1 = arith.constant 0 : i32
    return %c0_i32, %c0_i32_0 : i32, i32
  }
  func.func @transform_4(%arg0: i32) -> (i32, i32) {
    %c0_i32 = arith.constant 0 : i32
    %c0_i32_0 = arith.constant 0 : i32
    %c0_i32_1 = arith.constant 0 : i32
    return %c0_i32, %c0_i32_0 : i32, i32
  }
  func.func @transform_5(%arg0: i32) -> (i32, i32) {
    %c0_i32 = arith.constant 0 : i32
    %c0_i32_0 = arith.constant 0 : i32
    %c0_i32_1 = arith.constant 0 : i32
    return %c0_i32, %c0_i32_0 : i32, i32
  }
  func.func @transform_6(%arg0: i32) -> (i32, i32) {
    %c0_i32 = arith.constant 0 : i32
    %c0_i32_0 = arith.constant 0 : i32
    %c0_i32_1 = arith.constant 0 : i32
    return %c0_i32, %c0_i32_0 : i32, i32
  }
  func.func @transform_7(%arg0: i32) -> (i32, i32) {
    %c0_i32 = arith.constant 0 : i32
    %c0_i32_0 = arith.constant 0 : i32
    %c0_i32_1 = arith.constant 0 : i32
    return %c0_i32, %c0_i32_0 : i32, i32
  }
  func.func @transform_8(%arg0: i32) -> (i32, i32) {
    %c0_i32 = arith.constant 0 : i32
    %c0_i32_0 = arith.constant 0 : i32
    %c0_i32_1 = arith.constant 0 : i32
    return %c0_i32, %c0_i32_0 : i32, i32
  }
  func.func @transform_9(%arg0: i32) -> (i32, i32) {
    %c0_i32 = arith.constant 0 : i32
    %c0_i32_0 = arith.constant 0 : i32
    %c0_i32_1 = arith.constant 0 : i32
    return %c0_i32, %c0_i32_0 : i32, i32
  }
  func.func @transform_10(%arg0: i32) -> (i32, i32) {
    %c0_i32 = arith.constant 0 : i32
    %c0_i32_0 = arith.constant 0 : i32
    %c0_i32_1 = arith.constant 0 : i32
    return %c0_i32, %c0_i32_0 : i32, i32
  }
}

</mosaic_0001>

<llo_original>
// kernel: siamese_forward.1
$region0: #{siamese_forward.1}
  #allocation0 [shape = 'u32[]', space=smem, size = 0x4, offset = 0x4, fixed_abs, tag = 'smem constant byte address 0x4 - core index']
  #allocation1 [shape = 'u32[72,128]{1,0:T(1,128)}', space=vmem, size = 0x9000, scoped, tag = 'internal scratch']
  %s0 = inlined_call_operand.vmem [shape: bf16[1024,36], index: 0, kind: input, shape index: {}]
  %s1 = inlined_call_operand.vmem [shape: bf16[36,128], index: 1, kind: input, shape index: {}]
  %s2 = inlined_call_operand.vmem [shape: f32[1,128], index: 2, kind: input, shape index: {}]
  %s3 = inlined_call_operand.vmem [shape: bf16[128,128], index: 3, kind: input, shape index: {}]
  %s4 = inlined_call_operand.vmem [shape: f32[1,128], index: 4, kind: input, shape index: {}]
  %s5 = inlined_call_operand.vmem [shape: f32[1,128], index: 5, kind: input, shape index: {}]
  %s6 = inlined_call_operand.vmem [shape: f32[1,128], index: 6, kind: input, shape index: {}]
  %s7 = inlined_call_operand.vmem [shape: bf16[128,128], index: 7, kind: input, shape index: {}]
  %s8 = inlined_call_operand.vmem [shape: f32[1,128], index: 8, kind: input, shape index: {}]
  %s9 = inlined_call_operand.vmem [shape: f32[4,128], index: 9, kind: output, shape index: {0}]
  %s10 = inlined_call_operand.hbm [shape: f32[2,128], index: 10, kind: output, shape index: {1}]
  %11 = xla_tuple %s9, %s10
  %s12 = sld [smem:[#allocation0]]
  $region58: #{siamese_forward.1} parent=0
    _
  %s14 = ssub.s32 1, %s12
  %s15 = scalar_select 0, %s14, %s12
  $region1: #{siamese_forward.1} parent=0
    #allocation2 [shape = 'u8[1024]{0}', space=vmem, size = 0x400, scoped, tag = 'output window, operand 1, single buffered']
    #allocation3 [shape = 's32[1]{0}', space=sflag, size = 0x4, scoped, tag = 'scoped memory for siamese_forward.1']
    %16 = vsyncpa [#allocation3], 0
    // Predicated region
    $region2: #{siamese_forward.1} parent=1 // pred_check
      _
    $region3: #{siamese_forward.1} parent=1 // pred_check_branch
      %18 = sbr.rel (0) target = $region5
    $region4: #{siamese_forward.1} parent=1 // pred_region
      _
    $region5: #{siamese_forward.1} parent=1 // pred_fallthru
      _
    // Predicated region
    $region6: #{siamese_forward.1} parent=1 // pred_check
      _
    $region7: #{siamese_forward.1} parent=1 // pred_check_branch
      %20 = sbr.rel (0) target = $region9
    $region8: #{siamese_forward.1} parent=1 // pred_region
      _
    $region9: #{siamese_forward.1} parent=1 // pred_fallthru
      _
    // Predicated region
    $region10: #{siamese_forward.1} parent=1 // pred_check
      _
    $region11: #{siamese_forward.1} parent=1 // pred_check_branch
      %22 = sbr.rel (0) target = $region13
    $region12: #{siamese_forward.1} parent=1 // pred_region
      _
    $region13: #{siamese_forward.1} parent=1 // pred_fallthru
      _
    // Predicated region
    $region14: #{siamese_forward.1} parent=1 // pred_check
      _
    $region15: #{siamese_forward.1} parent=1 // pred_check_branch
      %24 = sbr.rel (0) target = $region17
    $region16: #{siamese_forward.1} parent=1 // pred_region
      _
    $region17: #{siamese_forward.1} parent=1 // pred_fallthru
      _
    // Predicated region
    $region18: #{siamese_forward.1} parent=1 // pred_check
      _
    $region19: #{siamese_forward.1} parent=1 // pred_check_branch
      %26 = sbr.rel (0) target = $region21
    $region20: #{siamese_forward.1} parent=1 // pred_region
      _
    $region21: #{siamese_forward.1} parent=1 // pred_fallthru
      _
    // Predicated region
    $region22: #{siamese_forward.1} parent=1 // pred_check
      _
    $region23: #{siamese_forward.1} parent=1 // pred_check_branch
      %28 = sbr.rel (0) target = $region25
    $region24: #{siamese_forward.1} parent=1 // pred_region
      _
    $region25: #{siamese_forward.1} parent=1 // pred_fallthru
      _
    // Predicated region
    $region26: #{siamese_forward.1} parent=1 // pred_check
      _
    $region27: #{siamese_forward.1} parent=1 // pred_check_branch
      %30 = sbr.rel (0) target = $region29
    $region28: #{siamese_forward.1} parent=1 // pred_region
      _
    $region29: #{siamese_forward.1} parent=1 // pred_fallthru
      _
    // Predicated region
    $region30: #{siamese_forward.1} parent=1 // pred_check
      _
    $region31: #{siamese_forward.1} parent=1 // pred_check_branch
      %32 = sbr.rel (0) target = $region33
    $region32: #{siamese_forward.1} parent=1 // pred_region
      _
    $region33: #{siamese_forward.1} parent=1 // pred_fallthru
      _
    // Predicated region
    $region34: #{siamese_forward.1} parent=1 // pred_check
      _
    $region35: #{siamese_forward.1} parent=1 // pred_check_branch
      %34 = sbr.rel (0) target = $region37
    $region36: #{siamese_forward.1} parent=1 // pred_region
      _
    $region37: #{siamese_forward.1} parent=1 // pred_fallthru
      _
    %v36 = vld [vmem:[%s0] sm:$0xf]
    %v37 = vld [vmem:[%s0 + $0x4] sm:$0xf]
    %v38 = vld [vmem:[%s0 + $0x8] sm:$0xf]
    %v39 = vld [vmem:[%s0 + $0xc] sm:$0xf]
    %v40 = vld [vmem:[%s0 + $0x10] sm:$0xf]
    %v41 = vld [vmem:[%s0 + $0x14] sm:$0xf]
    %v42 = vld [vmem:[%s0 + $0x18] sm:$0xf]
    %v43 = vld [vmem:[%s0 + $0x1c] sm:$0xf]
    %v44 = vld [vmem:[%s0 + $0x20] sm:$0xf]
    %v45 = vld [vmem:[%s0 + $0x24] sm:$0xf]
    %v46 = vld [vmem:[%s0 + $0x28] sm:$0xf]
    %v47 = vld [vmem:[%s0 + $0x2c] sm:$0xf]
    %v48 = vld [vmem:[%s0 + $0x30] sm:$0xf]
    %v49 = vld [vmem:[%s0 + $0x34] sm:$0xf]
    %v50 = vld [vmem:[%s0 + $0x38] sm:$0xf]
    %v51 = vld [vmem:[%s0 + $0x3c] sm:$0xf]
    %v52 = vld [vmem:[%s0 + $0x40] sm:$0xf]
    %v53 = vld [vmem:[%s0 + $0x44] sm:$0xf]
    %v54 = vld [vmem:[%s0 + $0x48] sm:$0xf]
    %v55 = vld [vmem:[%s0 + $0x4c] sm:$0xf]
    %v56 = vld [vmem:[%s0 + $0x50] sm:$0xf]
    %v57 = vld [vmem:[%s0 + $0x54] sm:$0xf]
    %v58 = vld [vmem:[%s0 + $0x58] sm:$0xf]
    %v59 = vld [vmem:[%s0 + $0x5c] sm:$0xf]
    %v60 = vld [vmem:[%s0 + $0x60] sm:$0xf]
    %v61 = vld [vmem:[%s0 + $0x64] sm:$0xf]
    %v62 = vld [vmem:[%s0 + $0x68] sm:$0xf]
    %v63 = vld [vmem:[%s0 + $0x6c] sm:$0xf]
    %v64 = vld [vmem:[%s0 + $0x70] sm:$0xf]
    %v65 = vld [vmem:[%s0 + $0x74] sm:$0xf]
    %v66 = vld [vmem:[%s0 + $0x78] sm:$0xf]
    %v67 = vld [vmem:[%s0 + $0x7c] sm:$0xf]
    %v68 = vld [vmem:[%s0 + $0x80] sm:$0xf]
    %v69 = vld [vmem:[%s0 + $0x84] sm:$0xf]
    %v70 = vld [vmem:[%s0 + $0x88] sm:$0xf]
    %v71 = vld [vmem:[%s0 + $0x8c] sm:$0xf]
    %v72 = vld [vmem:[%s0 + $0x90] sm:$0xf]
    %v73 = vld [vmem:[%s0 + $0x94] sm:$0xf]
    %v74 = vld [vmem:[%s0 + $0x98] sm:$0xf]
    %v75 = vld [vmem:[%s0 + $0x9c] sm:$0xf]
    %v76 = vld [vmem:[%s0 + $0xa0] sm:$0xf]
    %v77 = vld [vmem:[%s0 + $0xa4] sm:$0xf]
    %v78 = vld [vmem:[%s0 + $0xa8] sm:$0xf]
    %v79 = vld [vmem:[%s0 + $0xac] sm:$0xf]
    %v80 = vld [vmem:[%s0 + $0xb0] sm:$0xf]
    %v81 = vld [vmem:[%s0 + $0xb4] sm:$0xf]
    %v82 = vld [vmem:[%s0 + $0xb8] sm:$0xf]
    %v83 = vld [vmem:[%s0 + $0xbc] sm:$0xf]
    %v84 = vld [vmem:[%s0 + $0xc0] sm:$0xf]
    %v85 = vld [vmem:[%s0 + $0xc4] sm:$0xf]
    %v86 = vld [vmem:[%s0 + $0xc8] sm:$0xf]
    %v87 = vld [vmem:[%s0 + $0xcc] sm:$0xf]
    %v88 = vld [vmem:[%s0 + $0xd0] sm:$0xf]
    %v89 = vld [vmem:[%s0 + $0xd4] sm:$0xf]
    %v90 = vld [vmem:[%s0 + $0xd8] sm:$0xf]
    %v91 = vld [vmem:[%s0 + $0xdc] sm:$0xf]
    %v92 = vld [vmem:[%s0 + $0xe0] sm:$0xf]
    %v93 = vld [vmem:[%s0 + $0xe4] sm:$0xf]
    %v94 = vld [vmem:[%s0 + $0xe8] sm:$0xf]
    %v95 = vld [vmem:[%s0 + $0xec] sm:$0xf]
    %v96 = vld [vmem:[%s0 + $0xf0] sm:$0xf]
    %v97 = vld [vmem:[%s0 + $0xf4] sm:$0xf]
    %v98 = vld [vmem:[%s0 + $0xf8] sm:$0xf]
    %v99 = vld [vmem:[%s0 + $0xfc] sm:$0xf]
    %v100 = vld [vmem:[%s0 + $0x100] sm:$0xf]
    %v101 = vld [vmem:[%s0 + $0x104] sm:$0xf]
    %v102 = vld [vmem:[%s0 + $0x108] sm:$0xf]
    %v103 = vld [vmem:[%s0 + $0x10c] sm:$0xf]
    %v104 = vld [vmem:[%s0 + $0x110] sm:$0xf]
    %v105 = vld [vmem:[%s0 + $0x114] sm:$0xf]
    %v106 = vld [vmem:[%s0 + $0x118] sm:$0xf]
    %v107 = vld [vmem:[%s0 + $0x11c] sm:$0xf]
    %v108 = vld [vmem:[%s0 + $0x120] sm:$0xf]
    %v109 = vld [vmem:[%s0 + $0x124] sm:$0xf]
    %v110 = vld [vmem:[%s0 + $0x128] sm:$0xf]
    %v111 = vld [vmem:[%s0 + $0x12c] sm:$0xf]
    %v112 = vld [vmem:[%s0 + $0x130] sm:$0xf]
    %v113 = vld [vmem:[%s0 + $0x134] sm:$0xf]
    %v114 = vld [vmem:[%s0 + $0x138] sm:$0xf]
    %v115 = vld [vmem:[%s0 + $0x13c] sm:$0xf]
    %v116 = vld [vmem:[%s0 + $0x140] sm:$0xf]
    %v117 = vld [vmem:[%s0 + $0x144] sm:$0xf]
    %v118 = vld [vmem:[%s0 + $0x148] sm:$0xf]
    %v119 = vld [vmem:[%s0 + $0x14c] sm:$0xf]
    %v120 = vld [vmem:[%s0 + $0x150] sm:$0xf]
    %v121 = vld [vmem:[%s0 + $0x154] sm:$0xf]
    %v122 = vld [vmem:[%s0 + $0x158] sm:$0xf]
    %v123 = vld [vmem:[%s0 + $0x15c] sm:$0xf]
    %v124 = vld [vmem:[%s0 + $0x160] sm:$0xf]
    %v125 = vld [vmem:[%s0 + $0x164] sm:$0xf]
    %v126 = vld [vmem:[%s0 + $0x168] sm:$0xf]
    %v127 = vld [vmem:[%s0 + $0x16c] sm:$0xf]
    %v128 = vld [vmem:[%s0 + $0x170] sm:$0xf]
    %v129 = vld [vmem:[%s0 + $0x174] sm:$0xf]
    %v130 = vld [vmem:[%s0 + $0x178] sm:$0xf]
    %v131 = vld [vmem:[%s0 + $0x17c] sm:$0xf]
    %v132 = vld [vmem:[%s0 + $0x180] sm:$0xf]
    %v133 = vld [vmem:[%s0 + $0x184] sm:$0xf]
    %v134 = vld [vmem:[%s0 + $0x188] sm:$0xf]
    %v135 = vld [vmem:[%s0 + $0x18c] sm:$0xf]
    %v136 = vld [vmem:[%s0 + $0x190] sm:$0xf]
    %v137 = vld [vmem:[%s0 + $0x194] sm:$0xf]
    %v138 = vld [vmem:[%s0 + $0x198] sm:$0xf]
    %v139 = vld [vmem:[%s0 + $0x19c] sm:$0xf]
    %v140 = vld [vmem:[%s0 + $0x1a0] sm:$0xf]
    %v141 = vld [vmem:[%s0 + $0x1a4] sm:$0xf]
    %v142 = vld [vmem:[%s0 + $0x1a8] sm:$0xf]
    %v143 = vld [vmem:[%s0 + $0x1ac] sm:$0xf]
    %v144 = vld [vmem:[%s0 + $0x1b0] sm:$0xf]
    %v145 = vld [vmem:[%s0 + $0x1b4] sm:$0xf]
    %v146 = vld [vmem:[%s0 + $0x1b8] sm:$0xf]
    %v147 = vld [vmem:[%s0 + $0x1bc] sm:$0xf]
    %v148 = vld [vmem:[%s0 + $0x1c0] sm:$0xf]
    %v149 = vld [vmem:[%s0 + $0x1c4] sm:$0xf]
    %v150 = vld [vmem:[%s0 + $0x1c8] sm:$0xf]
    %v151 = vld [vmem:[%s0 + $0x1cc] sm:$0xf]
    %v152 = vld [vmem:[%s0 + $0x1d0] sm:$0xf]
    %v153 = vld [vmem:[%s0 + $0x1d4] sm:$0xf]
    %v154 = vld [vmem:[%s0 + $0x1d8] sm:$0xf]
    %v155 = vld [vmem:[%s0 + $0x1dc] sm:$0xf]
    %v156 = vld [vmem:[%s0 + $0x1e0] sm:$0xf]
    %v157 = vld [vmem:[%s0 + $0x1e4] sm:$0xf]
    %v158 = vld [vmem:[%s0 + $0x1e8] sm:$0xf]
    %v159 = vld [vmem:[%s0 + $0x1ec] sm:$0xf]
    %v160 = vld [vmem:[%s0 + $0x1f0] sm:$0xf]
    %v161 = vld [vmem:[%s0 + $0x1f4] sm:$0xf]
    %v162 = vld [vmem:[%s0 + $0x1f8] sm:$0xf]
    %v163 = vld [vmem:[%s0 + $0x1fc] sm:$0xf]
    %v164 = vld [vmem:[%s1] sm:$0xf]
    %v165 = vld [vmem:[%s1 + $0x4] sm:$0xf]
    %v166 = vld [vmem:[%s1 + $0x8] sm:$0xf]
    %v167 = vld [vmem:[%s1 + $0xc] sm:$0xf]
    %v168 = vld [vmem:[%s1 + $0x10] sm:$0x3]
    %v169 = vld [vmem:[%s2] sm:$0x1]
    %v171 = vperm.slane %v169, 0
    %v301 = vunpack.c.l.b16 %v36
    %v302 = vunpack.c.l.b16 %v37
    %v303 = vunpack.c.l.b16 %v38
    %v304 = vunpack.c.l.b16 %v39
    %v305 = vunpack.c.l.b16 %v40
    %v306 = vunpack.c.l.b16 %v41
    %v307 = vunpack.c.l.b16 %v42
    %v308 = vunpack.c.l.b16 %v43
    %v309 = vunpack.c.l.b16 %v44
    %v310 = vunpack.c.l.b16 %v45
    %v311 = vunpack.c.l.b16 %v46
    %v312 = vunpack.c.l.b16 %v47
    %v313 = vunpack.c.l.b16 %v48
    %v314 = vunpack.c.l.b16 %v49
    %v315 = vunpack.c.l.b16 %v50
    %v316 = vunpack.c.l.b16 %v51
    %v317 = vunpack.c.l.b16 %v52
    %v318 = vunpack.c.l.b16 %v53
    %v319 = vunpack.c.l.b16 %v54
    %v320 = vunpack.c.l.b16 %v55
    %v321 = vunpack.c.l.b16 %v56
    %v322 = vunpack.c.l.b16 %v57
    %v323 = vunpack.c.l.b16 %v58
    %v324 = vunpack.c.l.b16 %v59
    %v325 = vunpack.c.l.b16 %v60
    %v326 = vunpack.c.l.b16 %v61
    %v327 = vunpack.c.l.b16 %v62
    %v328 = vunpack.c.l.b16 %v63
    %v329 = vunpack.c.l.b16 %v64
    %v330 = vunpack.c.l.b16 %v65
    %v331 = vunpack.c.l.b16 %v66
    %v332 = vunpack.c.l.b16 %v67
    %v333 = vunpack.c.l.b16 %v68
    %v334 = vunpack.c.l.b16 %v69
    %v335 = vunpack.c.l.b16 %v70
    %v336 = vunpack.c.l.b16 %v71
    %v337 = vunpack.c.l.b16 %v72
    %v338 = vunpack.c.l.b16 %v73
    %v339 = vunpack.c.l.b16 %v74
    %v340 = vunpack.c.l.b16 %v75
    %v341 = vunpack.c.l.b16 %v76
    %v342 = vunpack.c.l.b16 %v77
    %v343 = vunpack.c.l.b16 %v78
    %v344 = vunpack.c.l.b16 %v79
    %v345 = vunpack.c.l.b16 %v80
    %v346 = vunpack.c.l.b16 %v81
    %v347 = vunpack.c.l.b16 %v82
    %v348 = vunpack.c.l.b16 %v83
    %v349 = vunpack.c.l.b16 %v84
    %v350 = vunpack.c.l.b16 %v85
    %v351 = vunpack.c.l.b16 %v86
    %v352 = vunpack.c.l.b16 %v87
    %v353 = vunpack.c.l.b16 %v88
    %v354 = vunpack.c.l.b16 %v89
    %v355 = vunpack.c.l.b16 %v90
    %v356 = vunpack.c.l.b16 %v91
    %v357 = vunpack.c.l.b16 %v92
    %v358 = vunpack.c.l.b16 %v93
    %v359 = vunpack.c.l.b16 %v94
    %v360 = vunpack.c.l.b16 %v95
    %v361 = vunpack.c.l.b16 %v96
    %v362 = vunpack.c.l.b16 %v97
    %v363 = vunpack.c.l.b16 %v98
    %v364 = vunpack.c.l.b16 %v99
    %v365 = vunpack.c.l.b16 %v100
    %v366 = vunpack.c.l.b16 %v101
    %v367 = vunpack.c.l.b16 %v102
    %v368 = vunpack.c.l.b16 %v103
    %v369 = vunpack.c.l.b16 %v104
    %v370 = vunpack.c.l.b16 %v105
    %v371 = vunpack.c.l.b16 %v106
    %v372 = vunpack.c.l.b16 %v107
    %v373 = vunpack.c.l.b16 %v108
    %v374 = vunpack.c.l.b16 %v109
    %v375 = vunpack.c.l.b16 %v110
    %v376 = vunpack.c.l.b16 %v111
    %v377 = vunpack.c.l.b16 %v112
    %v378 = vunpack.c.l.b16 %v113
    %v379 = vunpack.c.l.b16 %v114
    %v380 = vunpack.c.l.b16 %v115
    %v381 = vunpack.c.l.b16 %v116
    %v382 = vunpack.c.l.b16 %v117
    %v383 = vunpack.c.l.b16 %v118
    %v384 = vunpack.c.l.b16 %v119
    %v385 = vunpack.c.l.b16 %v120
    %v386 = vunpack.c.l.b16 %v121
    %v387 = vunpack.c.l.b16 %v122
    %v388 = vunpack.c.l.b16 %v123
    %v389 = vunpack.c.l.b16 %v124
    %v390 = vunpack.c.l.b16 %v125
    %v391 = vunpack.c.l.b16 %v126
    %v392 = vunpack.c.l.b16 %v127
    %v393 = vunpack.c.l.b16 %v128
    %v394 = vunpack.c.l.b16 %v129
    %v395 = vunpack.c.l.b16 %v130
    %v396 = vunpack.c.l.b16 %v131
    %v397 = vunpack.c.l.b16 %v132
    %v398 = vunpack.c.l.b16 %v133
    %v399 = vunpack.c.l.b16 %v134
    %v400 = vunpack.c.l.b16 %v135
    %v401 = vunpack.c.l.b16 %v136
    %v402 = vunpack.c.l.b16 %v137
    %v403 = vunpack.c.l.b16 %v138
    %v404 = vunpack.c.l.b16 %v139
    %v405 = vunpack.c.l.b16 %v140
    %v406 = vunpack.c.l.b16 %v141
    %v407 = vunpack.c.l.b16 %v142
    %v408 = vunpack.c.l.b16 %v143
    %v409 = vunpack.c.l.b16 %v144
    %v410 = vunpack.c.l.b16 %v145
    %v411 = vunpack.c.l.b16 %v146
    %v412 = vunpack.c.l.b16 %v147
    %v413 = vunpack.c.l.b16 %v148
    %v414 = vunpack.c.l.b16 %v149
    %v415 = vunpack.c.l.b16 %v150
    %v416 = vunpack.c.l.b16 %v151
    %v417 = vunpack.c.l.b16 %v152
    %v418 = vunpack.c.l.b16 %v153
    %v419 = vunpack.c.l.b16 %v154
    %v420 = vunpack.c.l.b16 %v155
    %v421 = vunpack.c.l.b16 %v156
    %v422 = vunpack.c.l.b16 %v157
    %v423 = vunpack.c.l.b16 %v158
    %v424 = vunpack.c.l.b16 %v159
    %v425 = vunpack.c.l.b16 %v160
    %v426 = vunpack.c.l.b16 %v161
    %v427 = vunpack.c.l.b16 %v162
    %v428 = vunpack.c.l.b16 %v163
    %v429 = vpack.c.b16 %v302, %v301
    %v430 = vpack.c.b16 %v304, %v303
    %v431 = vpack.c.b16 %v306, %v305
    %v432 = vpack.c.b16 %v308, %v307
    %v433 = vpack.c.b16 %v310, %v309
    %v434 = vpack.c.b16 %v312, %v311
    %v435 = vpack.c.b16 %v314, %v313
    %v436 = vpack.c.b16 %v316, %v315
    %v437 = vpack.c.b16 %v318, %v317
    %v438 = vpack.c.b16 %v320, %v319
    %v439 = vpack.c.b16 %v322, %v321
    %v440 = vpack.c.b16 %v324, %v323
    %v441 = vpack.c.b16 %v326, %v325
    %v442 = vpack.c.b16 %v328, %v327
    %v443 = vpack.c.b16 %v330, %v329
    %v444 = vpack.c.b16 %v332, %v331
    %v445 = vpack.c.b16 %v334, %v333
    %v446 = vpack.c.b16 %v336, %v335
    %v447 = vpack.c.b16 %v338, %v337
    %v448 = vpack.c.b16 %v340, %v339
    %v449 = vpack.c.b16 %v342, %v341
    %v450 = vpack.c.b16 %v344, %v343
    %v451 = vpack.c.b16 %v346, %v345
    %v452 = vpack.c.b16 %v348, %v347
    %v453 = vpack.c.b16 %v350, %v349
    %v454 = vpack.c.b16 %v352, %v351
    %v455 = vpack.c.b16 %v354, %v353
    %v456 = vpack.c.b16 %v356, %v355
    %v457 = vpack.c.b16 %v358, %v357
    %v458 = vpack.c.b16 %v360, %v359
    %v459 = vpack.c.b16 %v362, %v361
    %v460 = vpack.c.b16 %v364, %v363
    %v461 = vpack.c.b16 %v366, %v365
    %v462 = vpack.c.b16 %v368, %v367
    %v463 = vpack.c.b16 %v370, %v369
    %v464 = vpack.c.b16 %v372, %v371
    %v465 = vpack.c.b16 %v374, %v373
    %v466 = vpack.c.b16 %v376, %v375
    %v467 = vpack.c.b16 %v378, %v377
    %v468 = vpack.c.b16 %v380, %v379
    %v469 = vpack.c.b16 %v382, %v381
    %v470 = vpack.c.b16 %v384, %v383
    %v471 = vpack.c.b16 %v386, %v385
    %v472 = vpack.c.b16 %v388, %v387
    %v473 = vpack.c.b16 %v390, %v389
    %v474 = vpack.c.b16 %v392, %v391
    %v475 = vpack.c.b16 %v394, %v393
    %v476 = vpack.c.b16 %v396, %v395
    %v477 = vpack.c.b16 %v398, %v397
    %v478 = vpack.c.b16 %v400, %v399
    %v479 = vpack.c.b16 %v402, %v401
    %v480 = vpack.c.b16 %v404, %v403
    %v481 = vpack.c.b16 %v406, %v405
    %v482 = vpack.c.b16 %v408, %v407
    %v483 = vpack.c.b16 %v410, %v409
    %v484 = vpack.c.b16 %v412, %v411
    %v485 = vpack.c.b16 %v414, %v413
    %v486 = vpack.c.b16 %v416, %v415
    %v487 = vpack.c.b16 %v418, %v417
    %v488 = vpack.c.b16 %v420, %v419
    %v489 = vpack.c.b16 %v422, %v421
    %v490 = vpack.c.b16 %v424, %v423
    %v491 = vpack.c.b16 %v426, %v425
    %v492 = vpack.c.b16 %v428, %v427
    %v498 = vunpack.c.l.b16 %v164
    %v499 = vunpack.c.l.b16 %v165
    %v500 = vunpack.c.l.b16 %v166
    %v501 = vunpack.c.l.b16 %v167
    %v502 = vunpack.c.l.b16 %v168
    %v503 = vpack.c.b16 %v499, %v498
    %v504 = vpack.c.b16 %v501, %v500
    %v505 = vpack.c.b16 %v502, %v502
    %vm508 = vcmask 293888
    %v510 = vsel %vm508, %v429, 0
    %v513 = vsel %vm508, %v430, 0
    %v516 = vsel %vm508, %v431, 0
    %v519 = vsel %vm508, %v432, 0
    %v522 = vsel %vm508, %v433, 0
    %v525 = vsel %vm508, %v434, 0
    %v528 = vsel %vm508, %v435, 0
    %v531 = vsel %vm508, %v436, 0
    %v534 = vsel %vm508, %v437, 0
    %v537 = vsel %vm508, %v438, 0
    %v540 = vsel %vm508, %v439, 0
    %v543 = vsel %vm508, %v440, 0
    %v546 = vsel %vm508, %v441, 0
    %v549 = vsel %vm508, %v442, 0
    %v552 = vsel %vm508, %v443, 0
    %v555 = vsel %vm508, %v444, 0
    %v558 = vsel %vm508, %v445, 0
    %v561 = vsel %vm508, %v446, 0
    %v564 = vsel %vm508, %v447, 0
    %v567 = vsel %vm508, %v448, 0
    %v570 = vsel %vm508, %v449, 0
    %v573 = vsel %vm508, %v450, 0
    %v576 = vsel %vm508, %v451, 0
    %v579 = vsel %vm508, %v452, 0
    %v582 = vsel %vm508, %v453, 0
    %v585 = vsel %vm508, %v454, 0
    %v588 = vsel %vm508, %v455, 0
    %v591 = vsel %vm508, %v456, 0
    %v594 = vsel %vm508, %v457, 0
    %v597 = vsel %vm508, %v458, 0
    %v600 = vsel %vm508, %v459, 0
    %v603 = vsel %vm508, %v460, 0
    %v606 = vsel %vm508, %v461, 0
    %v609 = vsel %vm508, %v462, 0
    %v612 = vsel %vm508, %v463, 0
    %v615 = vsel %vm508, %v464, 0
    %v618 = vsel %vm508, %v465, 0
    %v621 = vsel %vm508, %v466, 0
    %v624 = vsel %vm508, %v467, 0
    %v627 = vsel %vm508, %v468, 0
    %v630 = vsel %vm508, %v469, 0
    %v633 = vsel %vm508, %v470, 0
    %v636 = vsel %vm508, %v471, 0
    %v639 = vsel %vm508, %v472, 0
    %v642 = vsel %vm508, %v473, 0
    %v645 = vsel %vm508, %v474, 0
    %v648 = vsel %vm508, %v475, 0
    %v651 = vsel %vm508, %v476, 0
    %v654 = vsel %vm508, %v477, 0
    %v657 = vsel %vm508, %v478, 0
    %v660 = vsel %vm508, %v479, 0
    %v663 = vsel %vm508, %v480, 0
    %v666 = vsel %vm508, %v481, 0
    %v669 = vsel %vm508, %v482, 0
    %v672 = vsel %vm508, %v483, 0
    %v675 = vsel %vm508, %v484, 0
    %v678 = vsel %vm508, %v485, 0
    %v681 = vsel %vm508, %v486, 0
    %v684 = vsel %vm508, %v487, 0
    %v687 = vsel %vm508, %v488, 0
    %v690 = vsel %vm508, %v489, 0
    %v693 = vsel %vm508, %v490, 0
    %v696 = vsel %vm508, %v491, 0
    %v699 = vsel %vm508, %v492, 0
    %vm701 = vcmask 1041408
    %v703 = vsel %vm701, %v505, 0
    %705 = vmatpush.bf16.msra.mxu0 0
    %706 = vmatpush.bf16.msra.mxu0 0
    %707 = vmatpush.bf16.msra.mxu0 0
    %708 = vmatpush.bf16.msra.mxu0 0
    %709 = vmatpush.bf16.msra.mxu0 0
    %710 = vmatpush.bf16.msra.mxu0 %v703
    %711 = vmatpush.bf16.msra.mxu0 %v504
    %712 = vmatpush.bf16.msra.mxu0 %v503
    %713 = vmatmul.bf16.gmra.mxu0 %v510
    %v714 = vpop.f32.mrf.mxu0
    %v715 = vadd.f32 %v171, %v714
    %v716 = vpop.f32.mrf.mxu0
    %v717 = vadd.f32 %v171, %v716
    %718 = vmatmul.bf16.gmra.mxu0 %v513
    %v719 = vpop.f32.mrf.mxu0
    %v720 = vadd.f32 %v171, %v719
    %v721 = vpop.f32.mrf.mxu0
    %v722 = vadd.f32 %v171, %v721
    %723 = vmatmul.bf16.gmra.mxu0 %v516
    %v724 = vpop.f32.mrf.mxu0
    %v725 = vadd.f32 %v171, %v724
    %v726 = vpop.f32.mrf.mxu0
    %v727 = vadd.f32 %v171, %v726
    %728 = vmatmul.bf16.gmra.mxu0 %v519
    %v729 = vpop.f32.mrf.mxu0
    %v730 = vadd.f32 %v171, %v729
    %v731 = vpop.f32.mrf.mxu0
    %v732 = vadd.f32 %v171, %v731
    %733 = vmatmul.bf16.gmra.mxu0 %v522
    %v734 = vpop.f32.mrf.mxu0
    %v735 = vadd.f32 %v171, %v734
    %v736 = vpop.f32.mrf.mxu0
    %v737 = vadd.f32 %v171, %v736
    %738 = vmatmul.bf16.gmra.mxu0 %v525
    %v739 = vpop.f32.mrf.mxu0
    %v740 = vadd.f32 %v171, %v739
    %v741 = vpop.f32.mrf.mxu0
    %v742 = vadd.f32 %v171, %v741
    %743 = vmatmul.bf16.gmra.mxu0 %v528
    %v744 = vpop.f32.mrf.mxu0
    %v745 = vadd.f32 %v171, %v744
    %v746 = vpop.f32.mrf.mxu0
    %v747 = vadd.f32 %v171, %v746
    %748 = vmatmul.bf16.gmra.mxu0 %v531
    %v749 = vpop.f32.mrf.mxu0
    %v750 = vadd.f32 %v171, %v749
    %v751 = vpop.f32.mrf.mxu0
    %v752 = vadd.f32 %v171, %v751
    %753 = vmatmul.bf16.gmra.mxu0 %v534
    %v754 = vpop.f32.mrf.mxu0
    %v755 = vadd.f32 %v171, %v754
    %v756 = vpop.f32.mrf.mxu0
    %v757 = vadd.f32 %v171, %v756
    %758 = vmatmul.bf16.gmra.mxu0 %v537
    %v759 = vpop.f32.mrf.mxu0
    %v760 = vadd.f32 %v171, %v759
    %v761 = vpop.f32.mrf.mxu0
    %v762 = vadd.f32 %v171, %v761
    %763 = vmatmul.bf16.gmra.mxu0 %v540
    %v764 = vpop.f32.mrf.mxu0
    %v765 = vadd.f32 %v171, %v764
    %v766 = vpop.f32.mrf.mxu0
    %v767 = vadd.f32 %v171, %v766
    %768 = vmatmul.bf16.gmra.mxu0 %v543
    %v769 = vpop.f32.mrf.mxu0
    %v770 = vadd.f32 %v171, %v769
    %v771 = vpop.f32.mrf.mxu0
    %v772 = vadd.f32 %v171, %v771
    %773 = vmatmul.bf16.gmra.mxu0 %v546
    %v774 = vpop.f32.mrf.mxu0
    %v775 = vadd.f32 %v171, %v774
    %v776 = vpop.f32.mrf.mxu0
    %v777 = vadd.f32 %v171, %v776
    %778 = vmatmul.bf16.gmra.mxu0 %v549
    %v779 = vpop.f32.mrf.mxu0
    %v780 = vadd.f32 %v171, %v779
    %v781 = vpop.f32.mrf.mxu0
    %v782 = vadd.f32 %v171, %v781
    %783 = vmatmul.bf16.gmra.mxu0 %v552
    %v784 = vpop.f32.mrf.mxu0
    %v785 = vadd.f32 %v171, %v784
    %v786 = vpop.f32.mrf.mxu0
    %v787 = vadd.f32 %v171, %v786
    %788 = vmatmul.bf16.gmra.mxu0 %v555
    %v789 = vpop.f32.mrf.mxu0
    %v790 = vadd.f32 %v171, %v789
    %v791 = vpop.f32.mrf.mxu0
    %v792 = vadd.f32 %v171, %v791
    %793 = vmatmul.bf16.gmra.mxu0 %v558
    %v794 = vpop.f32.mrf.mxu0
    %v795 = vadd.f32 %v171, %v794
    %v796 = vpop.f32.mrf.mxu0
    %v797 = vadd.f32 %v171, %v796
    %798 = vmatmul.bf16.gmra.mxu0 %v561
    %v799 = vpop.f32.mrf.mxu0
    %v800 = vadd.f32 %v171, %v799
    %v801 = vpop.f32.mrf.mxu0
    %v802 = vadd.f32 %v171, %v801
    %803 = vmatmul.bf16.gmra.mxu0 %v564
    %v804 = vpop.f32.mrf.mxu0
    %v805 = vadd.f32 %v171, %v804
    %v806 = vpop.f32.mrf.mxu0
    %v807 = vadd.f32 %v171, %v806
    %808 = vmatmul.bf16.gmra.mxu0 %v567
    %v809 = vpop.f32.mrf.mxu0
    %v810 = vadd.f32 %v171, %v809
    %v811 = vpop.f32.mrf.mxu0
    %v812 = vadd.f32 %v171, %v811
    %813 = vmatmul.bf16.gmra.mxu0 %v570
    %v814 = vpop.f32.mrf.mxu0
    %v815 = vadd.f32 %v171, %v814
    %v816 = vpop.f32.mrf.mxu0
    %v817 = vadd.f32 %v171, %v816
    %818 = vmatmul.bf16.gmra.mxu0 %v573
    %v819 = vpop.f32.mrf.mxu0
    %v820 = vadd.f32 %v171, %v819
    %v821 = vpop.f32.mrf.mxu0
    %v822 = vadd.f32 %v171, %v821
    %823 = vmatmul.bf16.gmra.mxu0 %v576
    %v824 = vpop.f32.mrf.mxu0
    %v825 = vadd.f32 %v171, %v824
    %v826 = vpop.f32.mrf.mxu0
    %v827 = vadd.f32 %v171, %v826
    %828 = vmatmul.bf16.gmra.mxu0 %v579
    %v829 = vpop.f32.mrf.mxu0
    %v830 = vadd.f32 %v171, %v829
    %v831 = vpop.f32.mrf.mxu0
    %v832 = vadd.f32 %v171, %v831
    %833 = vmatmul.bf16.gmra.mxu0 %v582
    %v834 = vpop.f32.mrf.mxu0
    %v835 = vadd.f32 %v171, %v834
    %v836 = vpop.f32.mrf.mxu0
    %v837 = vadd.f32 %v171, %v836
    %838 = vmatmul.bf16.gmra.mxu0 %v585
    %v839 = vpop.f32.mrf.mxu0
    %v840 = vadd.f32 %v171, %v839
    %v841 = vpop.f32.mrf.mxu0
    %v842 = vadd.f32 %v171, %v841
    %843 = vmatmul.bf16.gmra.mxu0 %v588
    %v844 = vpop.f32.mrf.mxu0
    %v845 = vadd.f32 %v171, %v844
    %v846 = vpop.f32.mrf.mxu0
    %v847 = vadd.f32 %v171, %v846
    %848 = vmatmul.bf16.gmra.mxu0 %v591
    %v849 = vpop.f32.mrf.mxu0
    %v850 = vadd.f32 %v171, %v849
    %v851 = vpop.f32.mrf.mxu0
    %v852 = vadd.f32 %v171, %v851
    %853 = vmatmul.bf16.gmra.mxu0 %v594
    %v854 = vpop.f32.mrf.mxu0
    %v855 = vadd.f32 %v171, %v854
    %v856 = vpop.f32.mrf.mxu0
    %v857 = vadd.f32 %v171, %v856
    %858 = vmatmul.bf16.gmra.mxu0 %v597
    %v859 = vpop.f32.mrf.mxu0
    %v860 = vadd.f32 %v171, %v859
    %v861 = vpop.f32.mrf.mxu0
    %v862 = vadd.f32 %v171, %v861
    %863 = vmatmul.bf16.gmra.mxu0 %v600
    %v864 = vpop.f32.mrf.mxu0
    %v865 = vadd.f32 %v171, %v864
    %v866 = vpop.f32.mrf.mxu0
    %v867 = vadd.f32 %v171, %v866
    %868 = vmatmul.bf16.gmra.mxu0 %v603
    %v869 = vpop.f32.mrf.mxu0
    %v870 = vadd.f32 %v171, %v869
    %v871 = vpop.f32.mrf.mxu0
    %v872 = vadd.f32 %v171, %v871
    %873 = vmatmul.bf16.gmra.mxu0 %v606
    %v874 = vpop.f32.mrf.mxu0
    %v875 = vadd.f32 %v171, %v874
    %v876 = vpop.f32.mrf.mxu0
    %v877 = vadd.f32 %v171, %v876
    %878 = vmatmul.bf16.gmra.mxu0 %v609
    %v879 = vpop.f32.mrf.mxu0
    %v880 = vadd.f32 %v171, %v879
    %v881 = vpop.f32.mrf.mxu0
    %v882 = vadd.f32 %v171, %v881
    %883 = vmatmul.bf16.gmra.mxu0 %v612
    %v884 = vpop.f32.mrf.mxu0
    %v885 = vadd.f32 %v171, %v884
    %v886 = vpop.f32.mrf.mxu0
    %v887 = vadd.f32 %v171, %v886
    %888 = vmatmul.bf16.gmra.mxu0 %v615
    %v889 = vpop.f32.mrf.mxu0
    %v890 = vadd.f32 %v171, %v889
    %v891 = vpop.f32.mrf.mxu0
    %v892 = vadd.f32 %v171, %v891
    %893 = vmatmul.bf16.gmra.mxu0 %v618
    %v894 = vpop.f32.mrf.mxu0
    %v895 = vadd.f32 %v171, %v894
    %v896 = vpop.f32.mrf.mxu0
    %v897 = vadd.f32 %v171, %v896
    %898 = vmatmul.bf16.gmra.mxu0 %v621
    %v899 = vpop.f32.mrf.mxu0
    %v900 = vadd.f32 %v171, %v899
    %v901 = vpop.f32.mrf.mxu0
    %v902 = vadd.f32 %v171, %v901
    %903 = vmatmul.bf16.gmra.mxu0 %v624
    %v904 = vpop.f32.mrf.mxu0
    %v905 = vadd.f32 %v171, %v904
    %v906 = vpop.f32.mrf.mxu0
    %v907 = vadd.f32 %v171, %v906
    %908 = vmatmul.bf16.gmra.mxu0 %v627
    %v909 = vpop.f32.mrf.mxu0
    %v910 = vadd.f32 %v171, %v909
    %v911 = vpop.f32.mrf.mxu0
    %v912 = vadd.f32 %v171, %v911
    %913 = vmatmul.bf16.gmra.mxu0 %v630
    %v914 = vpop.f32.mrf.mxu0
    %v915 = vadd.f32 %v171, %v914
    %v916 = vpop.f32.mrf.mxu0
    %v917 = vadd.f32 %v171, %v916
    %918 = vmatmul.bf16.gmra.mxu0 %v633
    %v919 = vpop.f32.mrf.mxu0
    %v920 = vadd.f32 %v171, %v919
    %v921 = vpop.f32.mrf.mxu0
    %v922 = vadd.f32 %v171, %v921
    %923 = vmatmul.bf16.gmra.mxu0 %v636
    %v924 = vpop.f32.mrf.mxu0
    %v925 = vadd.f32 %v171, %v924
    %v926 = vpop.f32.mrf.mxu0
    %v927 = vadd.f32 %v171, %v926
    %928 = vmatmul.bf16.gmra.mxu0 %v639
    %v929 = vpop.f32.mrf.mxu0
    %v930 = vadd.f32 %v171, %v929
    %v931 = vpop.f32.mrf.mxu0
    %v932 = vadd.f32 %v171, %v931
    %933 = vmatmul.bf16.gmra.mxu0 %v642
    %v934 = vpop.f32.mrf.mxu0
    %v935 = vadd.f32 %v171, %v934
    %v936 = vpop.f32.mrf.mxu0
    %v937 = vadd.f32 %v171, %v936
    %938 = vmatmul.bf16.gmra.mxu0 %v645
    %v939 = vpop.f32.mrf.mxu0
    %v940 = vadd.f32 %v171, %v939
    %v941 = vpop.f32.mrf.mxu0
    %v942 = vadd.f32 %v171, %v941
    %943 = vmatmul.bf16.gmra.mxu0 %v648
    %v944 = vpop.f32.mrf.mxu0
    %v945 = vadd.f32 %v171, %v944
    %v946 = vpop.f32.mrf.mxu0
    %v947 = vadd.f32 %v171, %v946
    %948 = vmatmul.bf16.gmra.mxu0 %v651
    %v949 = vpop.f32.mrf.mxu0
    %v950 = vadd.f32 %v171, %v949
    %v951 = vpop.f32.mrf.mxu0
    %v952 = vadd.f32 %v171, %v951
    %953 = vmatmul.bf16.gmra.mxu0 %v654
    %v954 = vpop.f32.mrf.mxu0
    %v955 = vadd.f32 %v171, %v954
    %v956 = vpop.f32.mrf.mxu0
    %v957 = vadd.f32 %v171, %v956
    %958 = vmatmul.bf16.gmra.mxu0 %v657
    %v959 = vpop.f32.mrf.mxu0
    %v960 = vadd.f32 %v171, %v959
    %v961 = vpop.f32.mrf.mxu0
    %v962 = vadd.f32 %v171, %v961
    %963 = vmatmul.bf16.gmra.mxu0 %v660
    %v964 = vpop.f32.mrf.mxu0
    %v965 = vadd.f32 %v171, %v964
    %v966 = vpop.f32.mrf.mxu0
    %v967 = vadd.f32 %v171, %v966
    %968 = vmatmul.bf16.gmra.mxu0 %v663
    %v969 = vpop.f32.mrf.mxu0
    %v970 = vadd.f32 %v171, %v969
    %v971 = vpop.f32.mrf.mxu0
    %v972 = vadd.f32 %v171, %v971
    %973 = vmatmul.bf16.gmra.mxu0 %v666
    %v974 = vpop.f32.mrf.mxu0
    %v975 = vadd.f32 %v171, %v974
    %v976 = vpop.f32.mrf.mxu0
    %v977 = vadd.f32 %v171, %v976
    %978 = vmatmul.bf16.gmra.mxu0 %v669
    %v979 = vpop.f32.mrf.mxu0
    %v980 = vadd.f32 %v171, %v979
    %v981 = vpop.f32.mrf.mxu0
    %v982 = vadd.f32 %v171, %v981
    %983 = vmatmul.bf16.gmra.mxu0 %v672
    %v984 = vpop.f32.mrf.mxu0
    %v985 = vadd.f32 %v171, %v984
    %v986 = vpop.f32.mrf.mxu0
    %v987 = vadd.f32 %v171, %v986
    %988 = vmatmul.bf16.gmra.mxu0 %v675
    %v989 = vpop.f32.mrf.mxu0
    %v990 = vadd.f32 %v171, %v989
    %v991 = vpop.f32.mrf.mxu0
    %v992 = vadd.f32 %v171, %v991
    %993 = vmatmul.bf16.gmra.mxu0 %v678
    %v994 = vpop.f32.mrf.mxu0
    %v995 = vadd.f32 %v171, %v994
    %v996 = vpop.f32.mrf.mxu0
    %v997 = vadd.f32 %v171, %v996
    %998 = vmatmul.bf16.gmra.mxu0 %v681
    %v999 = vpop.f32.mrf.mxu0
    %v1000 = vadd.f32 %v171, %v999
    %v1001 = vpop.f32.mrf.mxu0
    %v1002 = vadd.f32 %v171, %v1001
    %1003 = vmatmul.bf16.gmra.mxu0 %v684
    %v1004 = vpop.f32.mrf.mxu0
    %v1005 = vadd.f32 %v171, %v1004
    %v1006 = vpop.f32.mrf.mxu0
    %v1007 = vadd.f32 %v171, %v1006
    %1008 = vmatmul.bf16.gmra.mxu0 %v687
    %v1009 = vpop.f32.mrf.mxu0
    %v1010 = vadd.f32 %v171, %v1009
    %v1011 = vpop.f32.mrf.mxu0
    %v1012 = vadd.f32 %v171, %v1011
    %1013 = vmatmul.bf16.gmra.mxu0 %v690
    %v1014 = vpop.f32.mrf.mxu0
    %v1015 = vadd.f32 %v171, %v1014
    %v1016 = vpop.f32.mrf.mxu0
    %v1017 = vadd.f32 %v171, %v1016
    %1018 = vmatmul.bf16.gmra.mxu0 %v693
    %v1019 = vpop.f32.mrf.mxu0
    %v1020 = vadd.f32 %v171, %v1019
    %v1021 = vpop.f32.mrf.mxu0
    %v1022 = vadd.f32 %v171, %v1021
    %1023 = vmatmul.bf16.gmra.mxu0 %v696
    %v1024 = vpop.f32.mrf.mxu0
    %v1025 = vadd.f32 %v171, %v1024
    %v1026 = vpop.f32.mrf.mxu0
    %v1027 = vadd.f32 %v171, %v1026
    %1028 = vmatmul.bf16.gmra.mxu0 %v699
    %v1029 = vpop.f32.mrf.mxu0
    %v1030 = vadd.f32 %v171, %v1029
    %v1031 = vpop.f32.mrf.mxu0
    %v1032 = vadd.f32 %v171, %v1031
    %1033 = vdwg.mxu0
    %v1034 = vmax.f32 %v715, 0.0
    %v1035 = vmax.f32 %v717, 0.0
    %v1036 = vmax.f32 %v720, 0.0
    %v1037 = vmax.f32 %v722, 0.0
    %v1038 = vmax.f32 %v725, 0.0
    %v1039 = vmax.f32 %v727, 0.0
    %v1040 = vmax.f32 %v730, 0.0
    %v1041 = vmax.f32 %v732, 0.0
    %v1042 = vmax.f32 %v735, 0.0
    %v1043 = vmax.f32 %v737, 0.0
    %v1044 = vmax.f32 %v740, 0.0
    %v1045 = vmax.f32 %v742, 0.0
    %v1046 = vmax.f32 %v745, 0.0
    %v1047 = vmax.f32 %v747, 0.0
    %v1048 = vmax.f32 %v750, 0.0
    %v1049 = vmax.f32 %v752, 0.0
    %v1050 = vmax.f32 %v755, 0.0
    %v1051 = vmax.f32 %v757, 0.0
    %v1052 = vmax.f32 %v760, 0.0
    %v1053 = vmax.f32 %v762, 0.0
    %v1054 = vmax.f32 %v765, 0.0
    %v1055 = vmax.f32 %v767, 0.0
    %v1056 = vmax.f32 %v770, 0.0
    %v1057 = vmax.f32 %v772, 0.0
    %v1058 = vmax.f32 %v775, 0.0
    %v1059 = vmax.f32 %v777, 0.0
    %v1060 = vmax.f32 %v780, 0.0
    %v1061 = vmax.f32 %v782, 0.0
    %v1062 = vmax.f32 %v785, 0.0
    %v1063 = vmax.f32 %v787, 0.0
    %v1064 = vmax.f32 %v790, 0.0
    %v1065 = vmax.f32 %v792, 0.0
    %v1066 = vmax.f32 %v795, 0.0
    %v1067 = vmax.f32 %v797, 0.0
    %v1068 = vmax.f32 %v800, 0.0
    %v1069 = vmax.f32 %v802, 0.0
    %v1070 = vmax.f32 %v805, 0.0
    %v1071 = vmax.f32 %v807, 0.0
    %v1072 = vmax.f32 %v810, 0.0
    %v1073 = vmax.f32 %v812, 0.0
    %v1074 = vmax.f32 %v815, 0.0
    %v1075 = vmax.f32 %v817, 0.0
    %v1076 = vmax.f32 %v820, 0.0
    %v1077 = vmax.f32 %v822, 0.0
    %v1078 = vmax.f32 %v825, 0.0
    %v1079 = vmax.f32 %v827, 0.0
    %v1080 = vmax.f32 %v830, 0.0
    %v1081 = vmax.f32 %v832, 0.0
    %v1082 = vmax.f32 %v835, 0.0
    %v1083 = vmax.f32 %v837, 0.0
    %v1084 = vmax.f32 %v840, 0.0
    %v1085 = vmax.f32 %v842, 0.0
    %v1086 = vmax.f32 %v845, 0.0
    %v1087 = vmax.f32 %v847, 0.0
    %v1088 = vmax.f32 %v850, 0.0
    %v1089 = vmax.f32 %v852, 0.0
    %v1090 = vmax.f32 %v855, 0.0
    %v1091 = vmax.f32 %v857, 0.0
    %v1092 = vmax.f32 %v860, 0.0
    %v1093 = vmax.f32 %v862, 0.0
    %v1094 = vmax.f32 %v865, 0.0
    %v1095 = vmax.f32 %v867, 0.0
    %v1096 = vmax.f32 %v870, 0.0
    %v1097 = vmax.f32 %v872, 0.0
    %v1098 = vmax.f32 %v875, 0.0
    %v1099 = vmax.f32 %v877, 0.0
    %v1100 = vmax.f32 %v880, 0.0
    %v1101 = vmax.f32 %v882, 0.0
    %v1102 = vmax.f32 %v885, 0.0
    %v1103 = vmax.f32 %v887, 0.0
    %v1104 = vmax.f32 %v890, 0.0
    %v1105 = vmax.f32 %v892, 0.0
    %v1106 = vmax.f32 %v895, 0.0
    %v1107 = vmax.f32 %v897, 0.0
    %v1108 = vmax.f32 %v900, 0.0
    %v1109 = vmax.f32 %v902, 0.0
    %v1110 = vmax.f32 %v905, 0.0
    %v1111 = vmax.f32 %v907, 0.0
    %v1112 = vmax.f32 %v910, 0.0
    %v1113 = vmax.f32 %v912, 0.0
    %v1114 = vmax.f32 %v915, 0.0
    %v1115 = vmax.f32 %v917, 0.0
    %v1116 = vmax.f32 %v920, 0.0
    %v1117 = vmax.f32 %v922, 0.0
    %v1118 = vmax.f32 %v925, 0.0
    %v1119 = vmax.f32 %v927, 0.0
    %v1120 = vmax.f32 %v930, 0.0
    %v1121 = vmax.f32 %v932, 0.0
    %v1122 = vmax.f32 %v935, 0.0
    %v1123 = vmax.f32 %v937, 0.0
    %v1124 = vmax.f32 %v940, 0.0
    %v1125 = vmax.f32 %v942, 0.0
    %v1126 = vmax.f32 %v945, 0.0
    %v1127 = vmax.f32 %v947, 0.0
    %v1128 = vmax.f32 %v950, 0.0
    %v1129 = vmax.f32 %v952, 0.0
    %v1130 = vmax.f32 %v955, 0.0
    %v1131 = vmax.f32 %v957, 0.0
    %v1132 = vmax.f32 %v960, 0.0
    %v1133 = vmax.f32 %v962, 0.0
    %v1134 = vmax.f32 %v965, 0.0
    %v1135 = vmax.f32 %v967, 0.0
    %v1136 = vmax.f32 %v970, 0.0
    %v1137 = vmax.f32 %v972, 0.0
    %v1138 = vmax.f32 %v975, 0.0
    %v1139 = vmax.f32 %v977, 0.0
    %v1140 = vmax.f32 %v980, 0.0
    %v1141 = vmax.f32 %v982, 0.0
    %v1142 = vmax.f32 %v985, 0.0
    %v1143 = vmax.f32 %v987, 0.0
    %v1144 = vmax.f32 %v990, 0.0
    %v1145 = vmax.f32 %v992, 0.0
    %v1146 = vmax.f32 %v995, 0.0
    %v1147 = vmax.f32 %v997, 0.0
    %v1148 = vmax.f32 %v1000, 0.0
    %v1149 = vmax.f32 %v1002, 0.0
    %v1150 = vmax.f32 %v1005, 0.0
    %v1151 = vmax.f32 %v1007, 0.0
    %v1152 = vmax.f32 %v1010, 0.0
    %v1153 = vmax.f32 %v1012, 0.0
    %v1154 = vmax.f32 %v1015, 0.0
    %v1155 = vmax.f32 %v1017, 0.0
    %v1156 = vmax.f32 %v1020, 0.0
    %v1157 = vmax.f32 %v1022, 0.0
    %v1158 = vmax.f32 %v1025, 0.0
    %v1159 = vmax.f32 %v1027, 0.0
    %v1160 = vmax.f32 %v1030, 0.0
    %v1161 = vmax.f32 %v1032, 0.0
    %v1162 = vadd.f32 %v1034, %v1035
    %v1163 = vadd.f32 %v1162, %v1036
    %v1164 = vadd.f32 %v1163, %v1037
    %v1165 = vadd.f32 %v1164, %v1038
    %v1166 = vadd.f32 %v1165, %v1039
    %v1167 = vadd.f32 %v1166, %v1040
    %v1168 = vadd.f32 %v1167, %v1041
    %v1169 = vadd.f32 %v1168, %v1042
    %v1170 = vadd.f32 %v1169, %v1043
    %v1171 = vadd.f32 %v1170, %v1044
    %v1172 = vadd.f32 %v1171, %v1045
    %v1173 = vadd.f32 %v1172, %v1046
    %v1174 = vadd.f32 %v1173, %v1047
    %v1175 = vadd.f32 %v1174, %v1048
    %v1176 = vadd.f32 %v1175, %v1049
    %v1177 = vadd.f32 %v1176, %v1050
    %v1178 = vadd.f32 %v1177, %v1051
    %v1179 = vadd.f32 %v1178, %v1052
    %v1180 = vadd.f32 %v1179, %v1053
    %v1181 = vadd.f32 %v1180, %v1054
    %v1182 = vadd.f32 %v1181, %v1055
    %v1183 = vadd.f32 %v1182, %v1056
    %v1184 = vadd.f32 %v1183, %v1057
    %v1185 = vadd.f32 %v1184, %v1058
    %v1186 = vadd.f32 %v1185, %v1059
    %v1187 = vadd.f32 %v1186, %v1060
    %v1188 = vadd.f32 %v1187, %v1061
    %v1189 = vadd.f32 %v1188, %v1062
    %v1190 = vadd.f32 %v1189, %v1063
    %v1191 = vadd.f32 %v1190, %v1064
    %v1192 = vadd.f32 %v1191, %v1065
    %v1193 = vrot.slane %v1192, 4
    %v1194 = vadd.f32 %v1192, %v1193
    %v1195 = vrot.slane %v1194, 2
    %v1196 = vadd.f32 %v1194, %v1195
    %v1197 = vrot.slane %v1196, 1
    %v1198 = vadd.f32 %v1196, %v1197
    %v1199 = vadd.f32 %v1066, %v1067
    %v1200 = vadd.f32 %v1199, %v1068
    %v1201 = vadd.f32 %v1200, %v1069
    %v1202 = vadd.f32 %v1201, %v1070
    %v1203 = vadd.f32 %v1202, %v1071
    %v1204 = vadd.f32 %v1203, %v1072
    %v1205 = vadd.f32 %v1204, %v1073
    %v1206 = vadd.f32 %v1205, %v1074
    %v1207 = vadd.f32 %v1206, %v1075
    %v1208 = vadd.f32 %v1207, %v1076
    %v1209 = vadd.f32 %v1208, %v1077
    %v1210 = vadd.f32 %v1209, %v1078
    %v1211 = vadd.f32 %v1210, %v1079
    %v1212 = vadd.f32 %v1211, %v1080
    %v1213 = vadd.f32 %v1212, %v1081
    %v1214 = vadd.f32 %v1213, %v1082
    %v1215 = vadd.f32 %v1214, %v1083
    %v1216 = vadd.f32 %v1215, %v1084
    %v1217 = vadd.f32 %v1216, %v1085
    %v1218 = vadd.f32 %v1217, %v1086
    %v1219 = vadd.f32 %v1218, %v1087
    %v1220 = vadd.f32 %v1219, %v1088
    %v1221 = vadd.f32 %v1220, %v1089
    %v1222 = vadd.f32 %v1221, %v1090
    %v1223 = vadd.f32 %v1222, %v1091
    %v1224 = vadd.f32 %v1223, %v1092
    %v1225 = vadd.f32 %v1224, %v1093
    %v1226 = vadd.f32 %v1225, %v1094
    %v1227 = vadd.f32 %v1226, %v1095
    %v1228 = vadd.f32 %v1227, %v1096
    %v1229 = vadd.f32 %v1228, %v1097
    %v1230 = vrot.slane %v1229, 4
    %v1231 = vadd.f32 %v1229, %v1230
    %v1232 = vrot.slane %v1231, 2
    %v1233 = vadd.f32 %v1231, %v1232
    %v1234 = vrot.slane %v1233, 1
    %v1235 = vadd.f32 %v1233, %v1234
    %v1236 = vadd.f32 %v1098, %v1099
    %v1237 = vadd.f32 %v1236, %v1100
    %v1238 = vadd.f32 %v1237, %v1101
    %v1239 = vadd.f32 %v1238, %v1102
    %v1240 = vadd.f32 %v1239, %v1103
    %v1241 = vadd.f32 %v1240, %v1104
    %v1242 = vadd.f32 %v1241, %v1105
    %v1243 = vadd.f32 %v1242, %v1106
    %v1244 = vadd.f32 %v1243, %v1107
    %v1245 = vadd.f32 %v1244, %v1108
    %v1246 = vadd.f32 %v1245, %v1109
    %v1247 = vadd.f32 %v1246, %v1110
    %v1248 = vadd.f32 %v1247, %v1111
    %v1249 = vadd.f32 %v1248, %v1112
    %v1250 = vadd.f32 %v1249, %v1113
    %v1251 = vadd.f32 %v1250, %v1114
    %v1252 = vadd.f32 %v1251, %v1115
    %v1253 = vadd.f32 %v1252, %v1116
    %v1254 = vadd.f32 %v1253, %v1117
    %v1255 = vadd.f32 %v1254, %v1118
    %v1256 = vadd.f32 %v1255, %v1119
    %v1257 = vadd.f32 %v1256, %v1120
    %v1258 = vadd.f32 %v1257, %v1121
    %v1259 = vadd.f32 %v1258, %v1122
    %v1260 = vadd.f32 %v1259, %v1123
    %v1261 = vadd.f32 %v1260, %v1124
    %v1262 = vadd.f32 %v1261, %v1125
    %v1263 = vadd.f32 %v1262, %v1126
    %v1264 = vadd.f32 %v1263, %v1127
    %v1265 = vadd.f32 %v1264, %v1128
    %v1266 = vadd.f32 %v1265, %v1129
    %v1267 = vrot.slane %v1266, 4
    %v1268 = vadd.f32 %v1266, %v1267
    %v1269 = vrot.slane %v1268, 2
    %v1270 = vadd.f32 %v1268, %v1269
    %v1271 = vrot.slane %v1270, 1
    %v1272 = vadd.f32 %v1270, %v1271
    %v1273 = vadd.f32 %v1130, %v1131
    %v1274 = vadd.f32 %v1273, %v1132
    %v1275 = vadd.f32 %v1274, %v1133
    %v1276 = vadd.f32 %v1275, %v1134
    %v1277 = vadd.f32 %v1276, %v1135
    %v1278 = vadd.f32 %v1277, %v1136
    %v1279 = vadd.f32 %v1278, %v1137
    %v1280 = vadd.f32 %v1279, %v1138
    %v1281 = vadd.f32 %v1280, %v1139
    %v1282 = vadd.f32 %v1281, %v1140
    %v1283 = vadd.f32 %v1282, %v1141
    %v1284 = vadd.f32 %v1283, %v1142
    %v1285 = vadd.f32 %v1284, %v1143
    %v1286 = vadd.f32 %v1285, %v1144
    %v1287 = vadd.f32 %v1286, %v1145
    %v1288 = vadd.f32 %v1287, %v1146
    %v1289 = vadd.f32 %v1288, %v1147
    %v1290 = vadd.f32 %v1289, %v1148
    %v1291 = vadd.f32 %v1290, %v1149
    %v1292 = vadd.f32 %v1291, %v1150
    %v1293 = vadd.f32 %v1292, %v1151
    %v1294 = vadd.f32 %v1293, %v1152
    %v1295 = vadd.f32 %v1294, %v1153
    %v1296 = vadd.f32 %v1295, %v1154
    %v1297 = vadd.f32 %v1296, %v1155
    %v1298 = vadd.f32 %v1297, %v1156
    %v1299 = vadd.f32 %v1298, %v1157
    %v1300 = vadd.f32 %v1299, %v1158
    %v1301 = vadd.f32 %v1300, %v1159
    %v1302 = vadd.f32 %v1301, %v1160
    %v1303 = vadd.f32 %v1302, %v1161
    %v1304 = vrot.slane %v1303, 4
    %v1305 = vadd.f32 %v1303, %v1304
    %v1306 = vrot.slane %v1305, 2
    %v1307 = vadd.f32 %v1305, %v1306
    %v1308 = vrot.slane %v1307, 1
    %v1309 = vadd.f32 %v1307, %v1308
    %v1310 = vpack.c.bf16 %v1198, %v1198
    %v1311 = vpack.c.bf16 %v1235, %v1235
    %v1312 = vpack.c.bf16 %v1272, %v1272
    %v1313 = vpack.c.bf16 %v1309, %v1309
    %v1314 = vld [vmem:[%s3] sm:$0xf]
    %v1315 = vld [vmem:[%s3 + $0x4] sm:$0xf]
    %v1316 = vld [vmem:[%s3 + $0x8] sm:$0xf]
    %v1317 = vld [vmem:[%s3 + $0xc] sm:$0xf]
    %v1318 = vld [vmem:[%s3 + $0x10] sm:$0xf]
    %v1319 = vld [vmem:[%s3 + $0x14] sm:$0xf]
    %v1320 = vld [vmem:[%s3 + $0x18] sm:$0xf]
    %v1321 = vld [vmem:[%s3 + $0x1c] sm:$0xf]
    %v1322 = vld [vmem:[%s3 + $0x20] sm:$0xf]
    %v1323 = vld [vmem:[%s3 + $0x24] sm:$0xf]
    %v1324 = vld [vmem:[%s3 + $0x28] sm:$0xf]
    %v1325 = vld [vmem:[%s3 + $0x2c] sm:$0xf]
    %v1326 = vld [vmem:[%s3 + $0x30] sm:$0xf]
    %v1327 = vld [vmem:[%s3 + $0x34] sm:$0xf]
    %v1328 = vld [vmem:[%s3 + $0x38] sm:$0xf]
    %v1329 = vld [vmem:[%s3 + $0x3c] sm:$0xf]
    %v1330 = vld [vmem:[%s4] sm:$0x1]
    %v1332 = vperm.slane %v1330, 0
    %v1338 = vunpack.c.l.b16 %v1310
    %v1339 = vunpack.c.l.b16 %v1311
    %v1340 = vunpack.c.l.b16 %v1312
    %v1341 = vunpack.c.l.b16 %v1313
    %vm1342 = vcmask 1041409
    %v1343 = vsel %vm1342, %v1339, %v1338
    %vm1344 = vcmask 1042434
    %v1345 = vsel %vm1344, %v1340, %v1343
    %vm1346 = vcmask 1043459
    %v1347 = vsel %vm1346, %v1341, %v1345
    %v1348 = vpack.c.b16 %v1347, %v1347
    %v1366 = vunpack.c.l.b16 %v1314
    %v1367 = vunpack.c.l.b16 %v1315
    %v1368 = vunpack.c.l.b16 %v1316
    %v1369 = vunpack.c.l.b16 %v1317
    %v1370 = vunpack.c.l.b16 %v1318
    %v1371 = vunpack.c.l.b16 %v1319
    %v1372 = vunpack.c.l.b16 %v1320
    %v1373 = vunpack.c.l.b16 %v1321
    %v1374 = vunpack.c.l.b16 %v1322
    %v1375 = vunpack.c.l.b16 %v1323
    %v1376 = vunpack.c.l.b16 %v1324
    %v1377 = vunpack.c.l.b16 %v1325
    %v1378 = vunpack.c.l.b16 %v1326
    %v1379 = vunpack.c.l.b16 %v1327
    %v1380 = vunpack.c.l.b16 %v1328
    %v1381 = vunpack.c.l.b16 %v1329
    %v1382 = vpack.c.b16 %v1367, %v1366
    %v1383 = vpack.c.b16 %v1369, %v1368
    %v1384 = vpack.c.b16 %v1371, %v1370
    %v1385 = vpack.c.b16 %v1373, %v1372
    %v1386 = vpack.c.b16 %v1375, %v1374
    %v1387 = vpack.c.b16 %v1377, %v1376
    %v1388 = vpack.c.b16 %v1379, %v1378
    %v1389 = vpack.c.b16 %v1381, %v1380
    %1398 = vmatpush.bf16.msra.mxu0 %v1389
    %1399 = vmatpush.bf16.msra.mxu0 %v1388
    %1400 = vmatpush.bf16.msra.mxu0 %v1387
    %1401 = vmatpush.bf16.msra.mxu0 %v1386
    %1402 = vmatpush.bf16.msra.mxu0 %v1385
    %1403 = vmatpush.bf16.msra.mxu0 %v1384
    %1404 = vmatpush.bf16.msra.mxu0 %v1383
    %1405 = vmatpush.bf16.msra.mxu0 %v1382
    %1406 = vmatmul.bf16.gmra.mxu0 %v1348
    %v1407 = vpop.f32.mrf.mxu0
    %v1408 = vadd.f32 %v1332, %v1407
    %v1409 = vpop.f32.mrf.mxu0
    %1410 = vdwg.mxu0
    %s1411 = smul.u32 0, 4
    %s1412 = scalar_lea.vmem %s9, %s1411
    %1413 = vst [vmem:[%s1412] sm:$0xf] %v1408
    %p1414 = scmp.eq.s32.totalorder 0, 0
    // Predicated region
    $region38: #{siamese_forward.1} parent=1 // pred_check
      %p1415 = pneg %p1414
    $region39: #{siamese_forward.1} parent=1 // pred_check_branch
      %1417 = sbr.rel (%p1415) target = $region41
    $region40: #{siamese_forward.1} parent=1 // pred_region
      %v1418 = vld [vmem:[%s9] sm:$0xf]
      %v1420 = vrot.slane %v1418, 2
      %v1422 = vsub.f32 %v1418, %v1420
      %v1423 = vmul.f32 %v1422, %v1422
      %v1424 = vld [vmem:[%s5] sm:$0x1]
      %v1426 = vperm.slane %v1424, 0
      %v1428 = vmul.f32 %v1423, %v1426
      %v1429 = vld [vmem:[%s6] sm:$0x1]
      %v1431 = vperm.slane %v1429, 0
      %v1433 = vadd.f32 %v1428, %v1431
      %v1434 = vpack.c.bf16 %v1433, %v1433
      %v1435 = vld [vmem:[%s7] sm:$0xf]
      %v1436 = vld [vmem:[%s7 + $0x4] sm:$0xf]
      %v1437 = vld [vmem:[%s7 + $0x8] sm:$0xf]
      %v1438 = vld [vmem:[%s7 + $0xc] sm:$0xf]
      %v1439 = vld [vmem:[%s7 + $0x10] sm:$0xf]
      %v1440 = vld [vmem:[%s7 + $0x14] sm:$0xf]
      %v1441 = vld [vmem:[%s7 + $0x18] sm:$0xf]
      %v1442 = vld [vmem:[%s7 + $0x1c] sm:$0xf]
      %v1443 = vld [vmem:[%s7 + $0x20] sm:$0xf]
      %v1444 = vld [vmem:[%s7 + $0x24] sm:$0xf]
      %v1445 = vld [vmem:[%s7 + $0x28] sm:$0xf]
      %v1446 = vld [vmem:[%s7 + $0x2c] sm:$0xf]
      %v1447 = vld [vmem:[%s7 + $0x30] sm:$0xf]
      %v1448 = vld [vmem:[%s7 + $0x34] sm:$0xf]
      %v1449 = vld [vmem:[%s7 + $0x38] sm:$0xf]
      %v1450 = vld [vmem:[%s7 + $0x3c] sm:$0xf]
      %v1451 = vld [vmem:[%s8] sm:$0x1]
      %v1453 = vperm.slane %v1451, 0
      %v1471 = vunpack.c.l.b16 %v1435
      %v1472 = vunpack.c.l.b16 %v1436
      %v1473 = vunpack.c.l.b16 %v1437
      %v1474 = vunpack.c.l.b16 %v1438
      %v1475 = vunpack.c.l.b16 %v1439
      %v1476 = vunpack.c.l.b16 %v1440
      %v1477 = vunpack.c.l.b16 %v1441
      %v1478 = vunpack.c.l.b16 %v1442
      %v1479 = vunpack.c.l.b16 %v1443
      %v1480 = vunpack.c.l.b16 %v1444
      %v1481 = vunpack.c.l.b16 %v1445
      %v1482 = vunpack.c.l.b16 %v1446
      %v1483 = vunpack.c.l.b16 %v1447
      %v1484 = vunpack.c.l.b16 %v1448
      %v1485 = vunpack.c.l.b16 %v1449
      %v1486 = vunpack.c.l.b16 %v1450
      %v1487 = vpack.c.b16 %v1472, %v1471
      %v1488 = vpack.c.b16 %v1474, %v1473
      %v1489 = vpack.c.b16 %v1476, %v1475
      %v1490 = vpack.c.b16 %v1478, %v1477
      %v1491 = vpack.c.b16 %v1480, %v1479
      %v1492 = vpack.c.b16 %v1482, %v1481
      %v1493 = vpack.c.b16 %v1484, %v1483
      %v1494 = vpack.c.b16 %v1486, %v1485
      %1503 = vmatpush.bf16.msra.mxu0 %v1494
      %1504 = vmatpush.bf16.msra.mxu0 %v1493
      %1505 = vmatpush.bf16.msra.mxu0 %v1492
      %1506 = vmatpush.bf16.msra.mxu0 %v1491
      %1507 = vmatpush.bf16.msra.mxu0 %v1490
      %1508 = vmatpush.bf16.msra.mxu0 %v1489
      %1509 = vmatpush.bf16.msra.mxu0 %v1488
      %1510 = vmatpush.bf16.msra.mxu0 %v1487
      %1511 = vmatmul.bf16.gmra.mxu0 %v1434
      %v1512 = vpop.f32.mrf.mxu0
      %v1513 = vadd.f32 %v1453, %v1512
      %v1514 = vpop.f32.mrf.mxu0
      %1515 = vdwg.mxu0
      %1516 = vst [vmem:[#allocation2] sm:$0x3] %v1513
    $region41: #{siamese_forward.1} parent=1 // pred_fallthru
      _
    // Predicated region
    $region42: #{siamese_forward.1} parent=1 // pred_check
      _
    $region43: #{siamese_forward.1} parent=1 // pred_check_branch
      %1518 = sbr.rel (0) target = $region45
    $region44: #{siamese_forward.1} parent=1 // pred_region
      _
    $region45: #{siamese_forward.1} parent=1 // pred_fallthru
      _
    // Predicated region
    $region46: #{siamese_forward.1} parent=1 // pred_check
      _
    $region47: #{siamese_forward.1} parent=1 // pred_check_branch
      %1520 = sbr.rel (0) target = $region49
    $region48: #{siamese_forward.1} parent=1 // pred_region
      %1522 = vsyncadd [#allocation3], 0
      %s1524 = sshll.u32 [#allocation2], 4
      %s1525 = int_to_ptr.vmem [resolvable:$true] %s1524
      %s1526 = sshll.u32 %s10, 4
      %s1527 = int_to_ptr.hbm [resolvable:$true] %s1526
      %1529 = dma.vmem_to_hbm [thread:$0]  %s1525, 32, %s1527, [#allocation3]
    $region49: #{siamese_forward.1} parent=1 // pred_fallthru
      _
    // Predicated region
    $region50: #{siamese_forward.1} parent=1 // pred_check
      _
    $region51: #{siamese_forward.1} parent=1 // pred_check_branch
      %1531 = sbr.rel (0) target = $region53
    $region52: #{siamese_forward.1} parent=1 // pred_region
      _
    $region53: #{siamese_forward.1} parent=1 // pred_fallthru
      _
    // Predicated region
    $region54: #{siamese_forward.1} parent=1 // pred_check
      _
    $region55: #{siamese_forward.1} parent=1 // pred_check_branch
      %1533 = sbr.rel (0) target = $region57
    $region56: #{siamese_forward.1} parent=1 // pred_region
      %1535 = dma.done [#allocation3], 32
    $region57: #{siamese_forward.1} parent=1 // pred_fallthru
      _
    %1536 = vsyncpa [#allocation3], 1

</llo_original>
